<compile_context>
chip_gen: v7x
topology: tpu7x:2x2x1
jax: 0.10.0
libtpu: 0.0.40
codegen_flags: <defaults>
</compile_context>

<pallas_src>
import jax
import jax.numpy as jnp
from jax.experimental import pallas as pl
from jax.experimental.pallas import tpu as pltpu

NS = 8                      # not defined in the PyTorch snippet; assumed constant
H_DIM = 26
Z_DIM = 4
IN_DIM = 3 * NS

_MAX_BATCH_TILE = 4096      # lanes (batch rows) per grid step


def _round_up(n, m):
    return ((n + m - 1) // m) * m


def encoder_kernel(x_ref, w1_ref, b1_ref, wh_ref, bh_ref, eps_ref, out_ref):
    # Transposed layout: batch on the lane axis (last dim).
    x_t = x_ref[...]                                              # (IN_DIM, TB)

    # fc1 + sigmoid (sigmoid -> exp/recip on the EUP slot)
    h1 = jnp.dot(w1_ref[...], x_t, preferred_element_type=jnp.float32)   # (H_DIM, TB)
    h1 = jax.nn.sigmoid(h1 + b1_ref[...])

    # fused head: rows 0..Z_DIM-1 = mu, rows Z_DIM..2*Z_DIM-1 = logvar
    head = jnp.dot(wh_ref[...], h1, preferred_element_type=jnp.float32)  # (2*Z_DIM, TB)
    head = head + bh_ref[...]

    mu = head[:Z_DIM, :]                                          # sublane slices
    logvar = head[Z_DIM:, :]

    # reparameterization: z = mu + exp(logvar / 2) * eps
    z = mu + jnp.exp(logvar * 0.5) * eps_ref[...]                 # (Z_DIM, TB)

    # packed lane-dense store: [mu | logvar | z] along sublanes
    out_ref[...] = jnp.concatenate([head, z], axis=0)             # (3*Z_DIM, TB)


def encoder_forward(x, params, eps):
    """Returns (z, mu, logvar) matching the PyTorch Encoder.forward semantics."""
    B = x.shape[0]
    w1, b1, wmu, bmu, wsig, bsig = params

    # Fuse fcmu/fcsig and pre-transpose all parameters once (trivially cheap).
    w1_t = w1.T                                                   # (H_DIM, IN_DIM)
    b1_t = b1.reshape(H_DIM, 1)                                   # (H_DIM, 1)
    w_head_t = jnp.concatenate([wmu, wsig], axis=1).T             # (2*Z_DIM, H_DIM)
    b_head_t = jnp.concatenate([bmu, bsig], axis=1).reshape(2 * Z_DIM, 1)

    # Batch -> lane axis.
    x_t = x.T                                                     # (IN_DIM, B)
    eps_t = eps.T                                                 # (Z_DIM, B)

    # Lane-aligned batch tile; pad B up to a multiple of the tile.
    TB = min(_round_up(B, 128), _MAX_BATCH_TILE)
    Bp = _round_up(B, TB)
    if Bp != B:
        x_t = jnp.pad(x_t, ((0, 0), (0, Bp - B)))
        eps_t = jnp.pad(eps_t, ((0, 0), (0, Bp - B)))
    grid = (Bp // TB,)

    out = pl.pallas_call(
        encoder_kernel,
        out_shape=jax.ShapeDtypeStruct((3 * Z_DIM, Bp), jnp.float32),
        grid=grid,
        in_specs=[
            pl.BlockSpec((IN_DIM, TB), lambda i: (0, i)),         # x tile (pipelined)
            pl.BlockSpec((H_DIM, IN_DIM), lambda i: (0, 0)),      # W1^T (VMEM-resident)
            pl.BlockSpec((H_DIM, 1), lambda i: (0, 0)),           # b1^T
            pl.BlockSpec((2 * Z_DIM, H_DIM), lambda i: (0, 0)),   # fused head weight^T
            pl.BlockSpec((2 * Z_DIM, 1), lambda i: (0, 0)),       # fused head bias^T
            pl.BlockSpec((Z_DIM, TB), lambda i: (0, i)),          # eps tile
        ],
        out_specs=pl.BlockSpec((3 * Z_DIM, TB), lambda i: (0, i)),
        compiler_params=pltpu.CompilerParams(
            dimension_semantics=("parallel",)),
    )(x_t, w1_t, b1_t, w_head_t, b_head_t, eps_t)

    out_b = out[:, :B].T                                          # (B, 3*Z_DIM)
    mu = out_b[:, 0:Z_DIM]
    logvar = out_b[:, Z_DIM:2 * Z_DIM]
    z = out_b[:, 2 * Z_DIM:3 * Z_DIM]
    return z, mu, logvar


def init_params(key):
    """Deterministic init mimicking nn.Linear default (uniform +/- 1/sqrt(fan_in))."""
    ks = jax.random.split(key, 6)

    def linear(kw, kb, fan_in, fan_out):
        bound = 1.0 / jnp.sqrt(jnp.float32(fan_in))
        w = jax.random.uniform(kw, (fan_in, fan_out), jnp.float32, -bound, bound)
        b = jax.random.uniform(kb, (1, fan_out), jnp.float32, -bound, bound)
        return w, b

    w1, b1 = linear(ks[0], ks[1], IN_DIM, H_DIM)
    wmu, bmu = linear(ks[2], ks[3], H_DIM, Z_DIM)
    wsig, bsig = linear(ks[4], ks[5], H_DIM, Z_DIM)
    return (w1, b1, wmu, bmu, wsig, bsig)


def _reference(x, params, eps):
    w1, b1, wmu, bmu, wsig, bsig = params
    h1 = jax.nn.sigmoid(x @ w1 + b1)
    mu = h1 @ wmu + bmu
    lv = h1 @ wsig + bsig
    z = mu + jnp.exp(lv / 2) * eps
    return z, mu, lv


def _check(B, kx, keps, params):
    x = jax.random.normal(kx, (B, IN_DIM), jnp.float32)
    eps = jax.random.normal(keps, (B, Z_DIM), jnp.float32)       # torch.randn_like(mu)
    z, mu, lv = encoder_forward(x, params, eps)
    jax.block_until_ready((z, mu, lv))
    z_r, mu_r, lv_r = _reference(x, params, eps)
    assert jnp.allclose(mu, mu_r, atol=1e-5), f"mu mismatch (B={B})"
    assert jnp.allclose(lv, lv_r, atol=1e-5), f"logvar mismatch (B={B})"
    assert jnp.allclose(z, z_r, atol=1e-5), f"z mismatch (B={B})"


if __name__ == "__main__":
    key = jax.random.PRNGKey(0)
    k_param, k1, k2, k3, k4, k5, k6 = jax.random.split(key, 7)
    params = init_params(k_param)

    _check(8, k1, k2, params)      # small batch, single padded tile
    _check(70, k3, k4, params)     # non-multiple-of-128 batch (lane padding path)
    _check(4500, k5, k6, params)   # multi-grid-step batch (2 tiles of 4096)

    print("KERNEL_OK")
</pallas_src>

<mosaic_0001>
module attributes {stable_mosaic.version = 11 : i64} {
  func.func @encoder_kernel(%arg0: i32, %arg1: memref<24x128xf32, #tpu.memory_space<vmem>>, %arg2: memref<26x24xf32, #tpu.memory_space<vmem>>, %arg3: memref<26x1xf32, #tpu.memory_space<vmem>>, %arg4: memref<8x26xf32, #tpu.memory_space<vmem>>, %arg5: memref<8x1xf32, #tpu.memory_space<vmem>>, %arg6: memref<4x128xf32, #tpu.memory_space<vmem>>, %arg7: memref<12x128xf32, #tpu.memory_space<vmem>>) attributes {dimension_semantics = [#tpu.dimension_semantics<parallel>], iteration_bounds = array<i64: 1>, scalar_prefetch = 0 : i64, scratch_operands = 0 : i64, tpu.core_type = #tpu.core_type<tc>, window_params = [{transform_indices = @transform_0, window_bounds = array<i64: 24, 128>}, {pipeline_mode = #tpu.pipeline_mode<synchronous>, transform_indices = @transform_1, window_bounds = array<i64: 26, 24>}, {pipeline_mode = #tpu.pipeline_mode<synchronous>, transform_indices = @transform_2, window_bounds = array<i64: 26, 1>}, {pipeline_mode = #tpu.pipeline_mode<synchronous>, transform_indices = @transform_3, window_bounds = array<i64: 8, 26>}, {pipeline_mode = #tpu.pipeline_mode<synchronous>, transform_indices = @transform_4, window_bounds = array<i64: 8, 1>}, {transform_indices = @transform_5, window_bounds = array<i64: 4, 128>}, {transform_indices = @transform_6, window_bounds = array<i64: 12, 128>}]} {
    %c0 = arith.constant 0 : index
    %c0_0 = arith.constant 0 : index
    %0 = vector.load %arg1[%c0, %c0_0] : memref<24x128xf32, #tpu.memory_space<vmem>>, vector<24x128xf32>
    %c0_1 = arith.constant 0 : index
    %c0_2 = arith.constant 0 : index
    %1 = vector.load %arg2[%c0_1, %c0_2] : memref<26x24xf32, #tpu.memory_space<vmem>>, vector<26x24xf32>
    %cst = arith.constant dense<0.000000e+00> : vector<26x128xf32>
    %2 = tpu.matmul %1, %0, %cst {dimension_numbers = #tpu.dot_dimension_numbers<[1], [0], [0], [1], [0, 0, 1, 1], [], []>} : vector<26x24xf32>, vector<24x128xf32>, vector<26x128xf32> -> vector<26x128xf32>
    %c0_3 = arith.constant 0 : index
    %c0_4 = arith.constant 0 : index
    %3 = vector.load %arg3[%c0_3, %c0_4] : memref<26x1xf32, #tpu.memory_space<vmem>>, vector<26x1xf32>
    %4 = vector.broadcast %3 : vector<26x1xf32> to vector<26x128xf32>
    %5 = arith.addf %2, %4 : vector<26x128xf32>
    %6 = arith.negf %5 : vector<26x128xf32>
    %7 = math.exp %6 : vector<26x128xf32>
    %cst_5 = arith.constant 1.000000e+00 : f32
    %8 = vector.broadcast %cst_5 : f32 to vector<26x128xf32>
    %9 = arith.addf %8, %7 : vector<26x128xf32>
    %10 = arith.divf %8, %9 : vector<26x128xf32>
    %c0_6 = arith.constant 0 : index
    %c0_7 = arith.constant 0 : index
    %11 = vector.load %arg4[%c0_6, %c0_7] : memref<8x26xf32, #tpu.memory_space<vmem>>, vector<8x26xf32>
    %cst_8 = arith.constant dense<0.000000e+00> : vector<8x128xf32>
    %12 = tpu.matmul %11, %10, %cst_8 {dimension_numbers = #tpu.dot_dimension_numbers<[1], [0], [0], [1], [0, 0, 1, 1], [], []>} : vector<8x26xf32>, vector<26x128xf32>, vector<8x128xf32> -> vector<8x128xf32>
    %c0_9 = arith.constant 0 : index
    %c0_10 = arith.constant 0 : index
    %13 = vector.load %arg5[%c0_9, %c0_10] : memref<8x1xf32, #tpu.memory_space<vmem>>, vector<8x1xf32>
    %14 = vector.broadcast %13 : vector<8x1xf32> to vector<8x128xf32>
    %15 = arith.addf %12, %14 : vector<8x128xf32>
    %16 = vector.extract_strided_slice %15 {offsets = [0, 0], sizes = [4, 128], strides = [1, 1]} : vector<8x128xf32> to vector<4x128xf32>
    %17 = vector.extract_strided_slice %15 {offsets = [4, 0], sizes = [4, 128], strides = [1, 1]} : vector<8x128xf32> to vector<4x128xf32>
    %cst_11 = arith.constant 5.000000e-01 : f32
    %18 = vector.broadcast %cst_11 : f32 to vector<4x128xf32>
    %19 = arith.mulf %17, %18 : vector<4x128xf32>
    %20 = math.exp %19 : vector<4x128xf32>
    %c0_12 = arith.constant 0 : index
    %c0_13 = arith.constant 0 : index
    %21 = vector.load %arg6[%c0_12, %c0_13] : memref<4x128xf32, #tpu.memory_space<vmem>>, vector<4x128xf32>
    %22 = arith.mulf %20, %21 : vector<4x128xf32>
    %23 = arith.addf %16, %22 : vector<4x128xf32>
    %24 = tpu.concatenate %15, %23 in 0 : vector<8x128xf32>, vector<4x128xf32> -> vector<12x128xf32>
    %c0_14 = arith.constant 0 : index
    %c0_15 = arith.constant 0 : index
    %25 = vector.load %arg7[%c0_14, %c0_15] : memref<12x128xf32, #tpu.memory_space<vmem>>, vector<12x128xf32>
    tpu.vector_store %arg7[%c0_14, %c0_15], %24 {strides = array<i32>} : memref<12x128xf32, #tpu.memory_space<vmem>>, vector<12x128xf32>,
    return
  }
  func.func @transform_0(%arg0: i32) -> (i32, i32) {
    %c0_i32 = arith.constant 0 : i32
    %c0_i32_0 = arith.constant 0 : i32
    return %c0_i32, %arg0 : i32, i32
  }
  func.func @transform_1(%arg0: i32) -> (i32, i32) {
    %c0_i32 = arith.constant 0 : i32
    %c0_i32_0 = arith.constant 0 : i32
    %c0_i32_1 = arith.constant 0 : i32
    return %c0_i32, %c0_i32_0 : i32, i32
  }
  func.func @transform_2(%arg0: i32) -> (i32, i32) {
    %c0_i32 = arith.constant 0 : i32
    %c0_i32_0 = arith.constant 0 : i32
    %c0_i32_1 = arith.constant 0 : i32
    return %c0_i32, %c0_i32_0 : i32, i32
  }
  func.func @transform_3(%arg0: i32) -> (i32, i32) {
    %c0_i32 = arith.constant 0 : i32
    %c0_i32_0 = arith.constant 0 : i32
    %c0_i32_1 = arith.constant 0 : i32
    return %c0_i32, %c0_i32_0 : i32, i32
  }
  func.func @transform_4(%arg0: i32) -> (i32, i32) {
    %c0_i32 = arith.constant 0 : i32
    %c0_i32_0 = arith.constant 0 : i32
    %c0_i32_1 = arith.constant 0 : i32
    return %c0_i32, %c0_i32_0 : i32, i32
  }
  func.func @transform_5(%arg0: i32) -> (i32, i32) {
    %c0_i32 = arith.constant 0 : i32
    %c0_i32_0 = arith.constant 0 : i32
    return %c0_i32, %arg0 : i32, i32
  }
  func.func @transform_6(%arg0: i32) -> (i32, i32) {
    %c0_i32 = arith.constant 0 : i32
    %c0_i32_0 = arith.constant 0 : i32
    return %c0_i32, %arg0 : i32, i32
  }
}

</mosaic_0001>

<llo_original>
// kernel: tpu_custom_call.1
$region0: #{tpu_custom_call.1}
  #allocation0 [shape = 'u32[]', space=smem, size = 0x4, offset = 0x4, fixed_abs, tag = 'smem constant byte address 0x4 - core index']
  #allocation1 [shape = 'u32[144,128]{1,0:T(1,128)}', space=vmem, size = 0x12000, scoped, tag = 'internal scratch']
  %s0 = inlined_call_operand.vmem [shape: f32[24,128], index: 0, kind: input, shape index: {}]
  %s1 = inlined_call_operand.vmem [shape: f32[26,24], index: 1, kind: input, shape index: {}]
  %s2 = inlined_call_operand.vmem [shape: f32[26,1], index: 2, kind: input, shape index: {}]
  %s3 = inlined_call_operand.vmem [shape: f32[8,26], index: 3, kind: input, shape index: {}]
  %s4 = inlined_call_operand.vmem [shape: f32[8,1], index: 4, kind: input, shape index: {}]
  %s5 = inlined_call_operand.vmem [shape: f32[4,128], index: 5, kind: input, shape index: {}]
  %s6 = inlined_call_operand.hbm [shape: f32[12,128], index: 6, kind: output, shape index: {}]
  %s7 = sld [smem:[#allocation0]]
  $region34: #{tpu_custom_call.1} parent=0
    _
  %s9 = ssub.s32 1, %s7
  %s10 = scalar_select 0, %s9, %s7
  $region1: #{tpu_custom_call.1} parent=0
    #allocation2 [shape = 'u8[8192]{0}', space=vmem, size = 0x2000, scoped, tag = 'output window, operand 0, single buffered']
    #allocation3 [shape = 's32[1]{0}', space=sflag, size = 0x4, scoped, tag = 'scoped memory for tpu_custom_call.1']
    %11 = vsyncpa [#allocation3], 0
    // Predicated region
    $region2: #{tpu_custom_call.1} parent=1 // pred_check
      _
    $region3: #{tpu_custom_call.1} parent=1 // pred_check_branch
      %13 = sbr.rel (0) target = $region5
    $region4: #{tpu_custom_call.1} parent=1 // pred_region
      _
    $region5: #{tpu_custom_call.1} parent=1 // pred_fallthru
      _
    // Predicated region
    $region6: #{tpu_custom_call.1} parent=1 // pred_check
      _
    $region7: #{tpu_custom_call.1} parent=1 // pred_check_branch
      %15 = sbr.rel (0) target = $region9
    $region8: #{tpu_custom_call.1} parent=1 // pred_region
      _
    $region9: #{tpu_custom_call.1} parent=1 // pred_fallthru
      _
    // Predicated region
    $region10: #{tpu_custom_call.1} parent=1 // pred_check
      _
    $region11: #{tpu_custom_call.1} parent=1 // pred_check_branch
      %17 = sbr.rel (0) target = $region13
    $region12: #{tpu_custom_call.1} parent=1 // pred_region
      _
    $region13: #{tpu_custom_call.1} parent=1 // pred_fallthru
      _
    // Predicated region
    $region14: #{tpu_custom_call.1} parent=1 // pred_check
      _
    $region15: #{tpu_custom_call.1} parent=1 // pred_check_branch
      %19 = sbr.rel (0) target = $region17
    $region16: #{tpu_custom_call.1} parent=1 // pred_region
      _
    $region17: #{tpu_custom_call.1} parent=1 // pred_fallthru
      _
    // Predicated region
    $region18: #{tpu_custom_call.1} parent=1 // pred_check
      _
    $region19: #{tpu_custom_call.1} parent=1 // pred_check_branch
      %21 = sbr.rel (0) target = $region21
    $region20: #{tpu_custom_call.1} parent=1 // pred_region
      _
    $region21: #{tpu_custom_call.1} parent=1 // pred_fallthru
      _
    // Predicated region
    $region22: #{tpu_custom_call.1} parent=1 // pred_check
      _
    $region23: #{tpu_custom_call.1} parent=1 // pred_check_branch
      %23 = sbr.rel (0) target = $region25
    $region24: #{tpu_custom_call.1} parent=1 // pred_region
      _
    $region25: #{tpu_custom_call.1} parent=1 // pred_fallthru
      _
    %v24 = vld [vmem:[%s0] sm:$0xff]
    %v25 = vld [vmem:[%s0 + $0x8] sm:$0xff]
    %v26 = vld [vmem:[%s0 + $0x10] sm:$0xff]
    %v27 = vld [vmem:[%s1] sm:$0xff]
    %v28 = vld [vmem:[%s1 + $0x8] sm:$0xff]
    %v29 = vld [vmem:[%s1 + $0x10] sm:$0xff]
    %v30 = vld [vmem:[%s1 + $0x18] sm:$0x3]
    %v31 = vld [vmem:[%s2] sm:$0xff]
    %v32 = vld [vmem:[%s2 + $0x8] sm:$0xff]
    %v33 = vld [vmem:[%s2 + $0x10] sm:$0xff]
    %v34 = vld [vmem:[%s2 + $0x18] sm:$0x3]
    %36 = vset.pattern.permute.xlu0 0
    %37 = vperm.xlu0 %36, %v31
    %v38 = vpop.permute.xlu0 %37
    %41 = vset.pattern.permute.xlu0 0
    %42 = vperm.xlu0 %41, %v32
    %v43 = vpop.permute.xlu0 %42
    %46 = vset.pattern.permute.xlu0 0
    %47 = vperm.xlu0 %46, %v33
    %v48 = vpop.permute.xlu0 %47
    %51 = vset.pattern.permute.xlu0 0
    %52 = vperm.xlu0 %51, %v34
    %v53 = vpop.permute.xlu0 %52
    %vm55 = vcmask 195584
    %v57 = vsel %vm55, %v27, 0
    %v60 = vsel %vm55, %v28, 0
    %v63 = vsel %vm55, %v29, 0
    %v66 = vsel %vm55, %v30, 0
    %68 = vmatprep.subr.mxu0 0.0
    %69 = vmatpush1.msra.mxu0 %v24
    %70 = vmatprep.subr.mxu0 0.0
    %71 = vmatpush1.msra.mxu0 %v25
    %72 = vmatprep.subr.mxu0 0.0
    %73 = vmatpush1.msra.mxu0 %v26
    %74 = vmatprep.subr.mxu0 0.0
    %75 = vmatpush1.msra.mxu0 0.0
    %76 = vmatprep.subr.mxu0 0.0
    %77 = vmatpush1.msra.mxu0 0.0
    %78 = vmatprep.subr.mxu0 0.0
    %79 = vmatpush1.msra.mxu0 0.0
    %80 = vmatprep.subr.mxu0 0.0
    %81 = vmatpush1.msra.mxu0 0.0
    %82 = vmatprep.subr.mxu0 0.0
    %83 = vmatpush1.msra.mxu0 0.0
    %84 = vmatprep.subr.mxu0 0.0
    %85 = vmatpush1.msra.mxu0 0.0
    %86 = vmatprep.subr.mxu0 0.0
    %87 = vmatpush1.msra.mxu0 0.0
    %88 = vmatprep.subr.mxu0 0.0
    %89 = vmatpush1.msra.mxu0 0.0
    %90 = vmatprep.subr.mxu0 0.0
    %91 = vmatpush1.msra.mxu0 0.0
    %92 = vmatprep.subr.mxu0 0.0
    %93 = vmatpush1.msra.mxu0 0.0
    %94 = vmatprep.subr.mxu0 0.0
    %95 = vmatpush1.msra.mxu0 0.0
    %96 = vmatprep.subr.mxu0 0.0
    %97 = vmatpush1.msra.mxu0 0.0
    %98 = vmatprep.subr.mxu0 0.0
    %99 = vmatpush1.msra.mxu0 0.0
    %100 = vmatprep.subr.mxu0 0.0
    %101 = vmatpush1.msra.mxu0 0.0
    %102 = vmatprep.subr.mxu0 0.0
    %103 = vmatpush1.msra.mxu0 0.0
    %104 = vmatprep.subr.mxu0 0.0
    %105 = vmatpush1.msra.mxu0 0.0
    %106 = vmatprep.subr.mxu0 0.0
    %107 = vmatpush1.msra.mxu0 0.0
    %108 = vmatprep.subr.mxu0 0.0
    %109 = vmatpush1.msra.mxu0 0.0
    %110 = vmatprep.subr.mxu0 0.0
    %111 = vmatpush1.msra.mxu0 0.0
    %112 = vmatprep.subr.mxu0 0.0
    %113 = vmatpush1.msra.mxu0 0.0
    %114 = vmatprep.subr.mxu0 0.0
    %115 = vmatpush1.msra.mxu0 0.0
    %116 = vmatprep.subr.mxu0 0.0
    %117 = vmatpush1.msra.mxu0 0.0
    %118 = vmatprep.subr.mxu0 0.0
    %119 = vmatpush1.msra.mxu0 0.0
    %120 = vmatprep.subr.mxu0 0.0
    %121 = vmatpush1.msra.mxu0 0.0
    %122 = vmatprep.subr.mxu0 0.0
    %123 = vmatpush1.msra.mxu0 0.0
    %124 = vmatprep.subr.mxu0 0.0
    %125 = vmatpush1.msra.mxu0 0.0
    %126 = vmatprep.subr.mxu0 0.0
    %127 = vmatpush1.msra.mxu0 0.0
    %128 = vmatprep.subr.mxu0 0.0
    %129 = vmatpush1.msra.mxu0 0.0
    %130 = vmatprep.subr.mxu0 0.0
    %131 = vmatpush1.msra.mxu0 0.0
    %132 = vmatprep.mubr.f32.mxu0 0.0
    %133 = vmatmul.mubr.f32.gmra.mrb[0].mxu0 %v57
    %v134 = vpop.f32.mrb[0].mxu0
    %v135 = vadd.f32 %v38, %v134
    %v136 = vpop.f32.mrb[0].mxu0
    %137 = vmatprep.mubr.f32.mxu0 0.0
    %138 = vmatmul.mubr.f32.gmra.mrb[0].mxu0 %v60
    %v139 = vpop.f32.mrb[0].mxu0
    %v140 = vadd.f32 %v43, %v139
    %v141 = vpop.f32.mrb[0].mxu0
    %142 = vmatprep.mubr.f32.mxu0 0.0
    %143 = vmatmul.mubr.f32.gmra.mrb[0].mxu0 %v63
    %v144 = vpop.f32.mrb[0].mxu0
    %v145 = vadd.f32 %v48, %v144
    %v146 = vpop.f32.mrb[0].mxu0
    %147 = vmatprep.mubr.f32.mxu0 0.0
    %148 = vmatmul.mubr.f32.gmra.mrb[0].mxu0 %v66
    %v149 = vpop.f32.mrb[0].mxu0
    %v150 = vadd.f32 %v53, %v149
    %v151 = vpop.f32.mrb[0].mxu0
    %152 = vdwg.mxu0
    %v153 = vxor.u32 %v135, 2147483648
    %v154 = vxor.u32 %v140, 2147483648
    %v155 = vxor.u32 %v145, 2147483648
    %v156 = vxor.u32 %v150, 2147483648
    %v157 = vmul.f32 %v153, 1.442695
    %v158 = vpow.pop %v157
    %v159 = vmul.f32 %v154, 1.442695
    %v160 = vpow.pop %v159
    %v161 = vmul.f32 %v155, 1.442695
    %v162 = vpow.pop %v161
    %v163 = vmul.f32 %v156, 1.442695
    %v164 = vpow.pop %v163
    %v165 = vadd.f32 %v158, 1.0
    %v166 = vadd.f32 %v160, 1.0
    %v167 = vadd.f32 %v162, 1.0
    %v168 = vadd.f32 %v164, 1.0
    %v169 = vrcp.pop %v165
    %v170 = vmul.f32 1.0, %v169
    %v171 = vrcp.pop %v166
    %v172 = vmul.f32 1.0, %v171
    %v173 = vrcp.pop %v167
    %v174 = vmul.f32 1.0, %v173
    %v175 = vrcp.pop %v168
    %v176 = vmul.f32 1.0, %v175
    %v177 = vld [vmem:[%s3] sm:$0xff]
    %v178 = vld [vmem:[%s4] sm:$0xff]
    %180 = vset.pattern.permute.xlu0 0
    %181 = vperm.xlu0 %180, %v178
    %v182 = vpop.permute.xlu0 %181
    %vm184 = vcmask 211968
    %v186 = vsel %vm184, %v177, 0
    %vm188 = vcmask 1041408
    %v190 = vsel %vm188, %v176, 0
    %192 = vmatprep.subr.mxu0 0.0
    %193 = vmatpush1.msra.mxu0 %v170
    %194 = vmatprep.subr.mxu0 0.0
    %195 = vmatpush1.msra.mxu0 %v172
    %196 = vmatprep.subr.mxu0 0.0
    %197 = vmatpush1.msra.mxu0 %v174
    %198 = vmatprep.subr.mxu0 0.0
    %199 = vmatpush1.msra.mxu0 %v190
    %200 = vmatprep.subr.mxu0 0.0
    %201 = vmatpush1.msra.mxu0 0.0
    %202 = vmatprep.subr.mxu0 0.0
    %203 = vmatpush1.msra.mxu0 0.0
    %204 = vmatprep.subr.mxu0 0.0
    %205 = vmatpush1.msra.mxu0 0.0
    %206 = vmatprep.subr.mxu0 0.0
    %207 = vmatpush1.msra.mxu0 0.0
    %208 = vmatprep.subr.mxu0 0.0
    %209 = vmatpush1.msra.mxu0 0.0
    %210 = vmatprep.subr.mxu0 0.0
    %211 = vmatpush1.msra.mxu0 0.0
    %212 = vmatprep.subr.mxu0 0.0
    %213 = vmatpush1.msra.mxu0 0.0
    %214 = vmatprep.subr.mxu0 0.0
    %215 = vmatpush1.msra.mxu0 0.0
    %216 = vmatprep.subr.mxu0 0.0
    %217 = vmatpush1.msra.mxu0 0.0
    %218 = vmatprep.subr.mxu0 0.0
    %219 = vmatpush1.msra.mxu0 0.0
    %220 = vmatprep.subr.mxu0 0.0
    %221 = vmatpush1.msra.mxu0 0.0
    %222 = vmatprep.subr.mxu0 0.0
    %223 = vmatpush1.msra.mxu0 0.0
    %224 = vmatprep.subr.mxu0 0.0
    %225 = vmatpush1.msra.mxu0 0.0
    %226 = vmatprep.subr.mxu0 0.0
    %227 = vmatpush1.msra.mxu0 0.0
    %228 = vmatprep.subr.mxu0 0.0
    %229 = vmatpush1.msra.mxu0 0.0
    %230 = vmatprep.subr.mxu0 0.0
    %231 = vmatpush1.msra.mxu0 0.0
    %232 = vmatprep.subr.mxu0 0.0
    %233 = vmatpush1.msra.mxu0 0.0
    %234 = vmatprep.subr.mxu0 0.0
    %235 = vmatpush1.msra.mxu0 0.0
    %236 = vmatprep.subr.mxu0 0.0
    %237 = vmatpush1.msra.mxu0 0.0
    %238 = vmatprep.subr.mxu0 0.0
    %239 = vmatpush1.msra.mxu0 0.0
    %240 = vmatprep.subr.mxu0 0.0
    %241 = vmatpush1.msra.mxu0 0.0
    %242 = vmatprep.subr.mxu0 0.0
    %243 = vmatpush1.msra.mxu0 0.0
    %244 = vmatprep.subr.mxu0 0.0
    %245 = vmatpush1.msra.mxu0 0.0
    %246 = vmatprep.subr.mxu0 0.0
    %247 = vmatpush1.msra.mxu0 0.0
    %248 = vmatprep.subr.mxu0 0.0
    %249 = vmatpush1.msra.mxu0 0.0
    %250 = vmatprep.subr.mxu0 0.0
    %251 = vmatpush1.msra.mxu0 0.0
    %252 = vmatprep.subr.mxu0 0.0
    %253 = vmatpush1.msra.mxu0 0.0
    %254 = vmatprep.subr.mxu0 0.0
    %255 = vmatpush1.msra.mxu0 0.0
    %256 = vmatprep.mubr.f32.mxu0 0.0
    %257 = vmatmul.mubr.f32.gmra.mrb[0].mxu0 %v186
    %v258 = vpop.f32.mrb[0].mxu0
    %v259 = vadd.f32 %v182, %v258
    %v260 = vpop.f32.mrb[0].mxu0
    %261 = vdwg.mxu0
    %v262 = vmul.f32 %v259, 0.5
    %v263 = vmul.f32 %v262, 1.442695
    %v264 = vpow.pop %v263
    %v265 = vld [vmem:[%s5] sm:$0xf]
    %v267 = vrot.slane %v265, 4
    %v269 = vmul.f32 %v264, %v267
    %v271 = vrot.slane %v269, 4
    %v273 = vadd.f32 %v259, %v271
    %274 = vst [vmem:[#allocation2] sm:$0xff] %v259
    %275 = vst [vmem:[#allocation2 + $0x8] sm:$0xf] %v273
    // Predicated region
    $region26: #{tpu_custom_call.1} parent=1 // pred_check
      _
    $region27: #{tpu_custom_call.1} parent=1 // pred_check_branch
      %277 = sbr.rel (0) target = $region29
    $region28: #{tpu_custom_call.1} parent=1 // pred_region
      %s279 = ssub.s32 256, 256
      %280 = vsyncadd [#allocation3], %s279
      %s281 = sshll.u32 [#allocation2], 4
      %s282 = int_to_ptr.vmem [resolvable:$true] %s281
      %287 = dma.vmem_to_hbm [thread:$0]  %s282, 256, %s6, [#allocation3], 128, 128, 8
    $region29: #{tpu_custom_call.1} parent=1 // pred_fallthru
      _
    // Predicated region
    $region30: #{tpu_custom_call.1} parent=1 // pred_check
      _
    $region31: #{tpu_custom_call.1} parent=1 // pred_check_branch
      %289 = sbr.rel (0) target = $region33
    $region32: #{tpu_custom_call.1} parent=1 // pred_region
      %290 = dma.done [#allocation3], 256
    $region33: #{tpu_custom_call.1} parent=1 // pred_fallthru
      _
    %291 = vsyncpa [#allocation3], 1

</llo_original>
